<compile_context>
chip_gen: v6e
topology: v6e:2x2x1
jax: 0.10.0
libtpu: 0.0.40
codegen_flags: <defaults>
</compile_context>

<pallas_src>
import functools

import jax
import jax.numpy as jnp
from jax.experimental import pallas as pl
from jax.experimental.pallas import tpu as pltpu

_BIG = 1e30           # sentinel score, worse than any real squared-distance score
_INT_MAX = 2**31 - 1  # sentinel index


def _round_up(v, m):
    return ((v + m - 1) // m) * m


def _knn_kernel(x_ref, tt_ref, train_ref, idx_ref, val_acc, idx_acc, *, k, n_tile):
    """One (q_tile, n_tile) grid step of the streaming k-NN selection."""
    ni = pl.program_id(1)

    # ---- reset running top-k accumulator at the first N tile ---------------
    @pl.when(ni == 0)
    def _():
        val_acc[...] = jnp.full_like(val_acc, _BIG)
        idx_acc[...] = jnp.full_like(idx_acc, jnp.int32(_INT_MAX))

    x = x_ref[...]        # (Qt, D)  native dtype -> MXU (f32 accumulation below)
    t = train_ref[...]    # (Nt, D)
    tt = tt_ref[...]      # (1, Nt)  f32, precomputed ||t||^2 (padded rows = BIG)

    # score = ||t||^2 - 2 x.t^T : monotone in squared euclidean distance per
    # query row, so the returned indices match cdist(p=2) + topk(smallest).
    xt = jax.lax.dot_general(x, t, (((1,), (1,)), ((), ())),
                             preferred_element_type=jnp.float32)   # (Qt, Nt)
    score = tt - 2.0 * xt

    qt = score.shape[0]
    col = jax.lax.broadcasted_iota(jnp.int32, (qt, n_tile), 1) + ni * n_tile

    int_max = jnp.int32(_INT_MAX)
    big = jnp.float32(_BIG)

    # ---- local top-k over this N tile (k passes over the lane-aligned tile) -
    tile_vals, tile_idxs = [], []
    sc = score
    for _ in range(k):
        mval = jnp.min(sc, axis=1, keepdims=True)                       # (Qt, 1)
        sel = jnp.min(jnp.where(sc == mval, col, int_max),
                      axis=1, keepdims=True)                            # lowest index on ties
        tile_vals.append(mval)
        tile_idxs.append(sel)
        sc = jnp.where(col == sel, big, sc)

    # ---- O(K) merge with the running accumulator (2K-wide, tiny) -----------
    cand_val = jnp.concatenate([val_acc[...]] + tile_vals, axis=1)      # (Qt, 2K)
    cand_idx = jnp.concatenate([idx_acc[...]] + tile_idxs, axis=1)
    new_vals, new_idxs = [], []
    for _ in range(k):
        mval = jnp.min(cand_val, axis=1, keepdims=True)
        sel = jnp.min(jnp.where(cand_val == mval, cand_idx, int_max),
                      axis=1, keepdims=True)
        new_vals.append(mval)
        new_idxs.append(sel)
        cand_val = jnp.where(cand_idx == sel, big, cand_val)
    val_acc[...] = jnp.concatenate(new_vals, axis=1)
    idx_acc[...] = jnp.concatenate(new_idxs, axis=1)

    # ---- write the (sorted ascending) indices at the last N tile -----------
    @pl.when(ni == pl.num_programs(1) - 1)
    def _():
        idx_ref[...] = idx_acc[...]


def knn_forward(x, training_data, k, *, q_tile=256, n_tile=512):
    """Return (Q, k) int32 indices of the k nearest training points (euclidean)."""
    q, d = x.shape
    n, d2 = training_data.shape
    assert d == d2, "Input dimension must match training data."
    assert 0 < k <= n, "k must satisfy 0 < k <= number of training points."

    # Tile sizing (clamped so toy shapes don't over-pad):
    #   q_tile multiple of 8 (sublane), n_tile multiple of 128 (lane) and >= k.
    # For big problems: ~256/512+ on v6e, 128-multiples on v5e, and smaller
    # n_tile on v7x (64 MiB VMEM per core) -- tune via the kwargs.
    q_tile = min(q_tile, _round_up(q, 8))
    n_tile = min(n_tile, _round_up(n, 128))
    n_tile = max(n_tile, _round_up(k, 128))

    q_pad = _round_up(q, q_tile)
    n_pad = _round_up(n, n_tile)

    x_p = jnp.pad(x, ((0, q_pad - q), (0, 0))) if q_pad != q else x
    t_p = (jnp.pad(training_data, ((0, n_pad - n), (0, 0)))
           if n_pad != n else training_data)

    # Precompute ||t||^2 once (f32); padded rows get a BIG score so they are
    # never selected.
    tt = jnp.sum(jnp.square(t_p.astype(jnp.float32)), axis=1)
    tt = jnp.where(jnp.arange(n_pad) < n, tt, jnp.float32(_BIG))[None, :]   # (1, N_pad)

    grid = (q_pad // q_tile, n_pad // n_tile)

    isz_x = jnp.dtype(x.dtype).itemsize
    isz_t = jnp.dtype(training_data.dtype).itemsize
    cost = pl.CostEstimate(
        flops=2 * q_pad * n_pad * d,
        transcendentals=0,
        bytes_accessed=int(q_pad * d * isz_x
                           + grid[0] * (n_pad * d * isz_t + n_pad * 4)
                           + q_pad * k * 4),
    )

    # Rough VMEM budget: double-buffered inputs + distance working set + scratch.
    est = (2 * q_tile * d * isz_x
           + 2 * n_tile * d * isz_t
           + 2 * n_tile * 4
           + 2 * q_tile * k * 4
           + 4 * q_tile * (n_tile + 2 * k) * 4)
    vmem_limit = int(min(max(2 * est, 32 * 1024 * 1024), 64 * 1024 * 1024))

    kernel = functools.partial(_knn_kernel, k=k, n_tile=n_tile)
    out = pl.pallas_call(
        kernel,
        out_shape=jax.ShapeDtypeStruct((q_pad, k), jnp.int32),
        grid_spec=pltpu.PrefetchScalarGridSpec(
            num_scalar_prefetch=0,
            grid=grid,
            in_specs=[
                pl.BlockSpec((q_tile, d), lambda qi, ni: (qi, 0)),   # queries (resident per qi)
                pl.BlockSpec((1, n_tile), lambda qi, ni: (0, ni)),   # ||t||^2 row, streamed
                pl.BlockSpec((n_tile, d), lambda qi, ni: (ni, 0)),   # training tile, streamed
            ],
            out_specs=pl.BlockSpec((q_tile, k), lambda qi, ni: (qi, 0)),
            scratch_shapes=[
                pltpu.VMEM((q_tile, k), jnp.float32),   # running top-k scores
                pltpu.VMEM((q_tile, k), jnp.int32),     # running top-k indices
            ],
        ),
        compiler_params=pltpu.CompilerParams(
            dimension_semantics=("parallel", "arbitrary"),  # query axis shards across TCs (v7x)
            vmem_limit_bytes=vmem_limit,
        ),
        cost_estimate=cost,
    )(x_p, tt, t_p)

    return out[:q]


class KNN:
    """Minimal JAX/Pallas port of NaMAZU.lightning_wingman.KNN (euclidean)."""

    def __init__(self, n_neighbors, training_data=None, distance_measure="euclidean"):
        if distance_measure != "euclidean":
            # TODO(synk): manhattan / cosine / mahalanobis variants not ported.
            raise ValueError(f"{distance_measure} not supported in this Pallas port")
        self.k = n_neighbors
        self.training_data = training_data

    def fit(self, training_data):
        self.training_data = training_data

    def __call__(self, x):
        if self.training_data is None:
            raise ValueError("Model hasn't been fitted yet.")
        if x.ndim == 1:
            x = x[None, :]
        return knn_forward(x, self.training_data, self.k)


if __name__ == "__main__":
    key = jax.random.PRNGKey(0)

    configs = [
        (256, 32, 8, 5),    # tile-aligned
        (300, 32, 10, 5),   # exercises query / training-row padding paths
    ]
    for (N, D, Q, K) in configs:
        k_train, k_query = jax.random.split(jax.random.fold_in(key, N))
        training_data = jax.random.normal(k_train, (N, D), dtype=jnp.float32)
        x = jax.random.normal(k_query, (Q, D), dtype=jnp.float32)

        model = KNN(n_neighbors=K, training_data=training_data)
        idx = jax.block_until_ready(model(x))
        assert idx.shape == (Q, K)

        # Plain-JAX reference (ties are measure-zero with continuous random data).
        d2 = (jnp.sum(x * x, axis=1, keepdims=True)
              - 2.0 * x @ training_data.T
              + jnp.sum(training_data * training_data, axis=1)[None, :])
        _, ref_idx = jax.lax.top_k(-d2, K)
        ref_idx = ref_idx.astype(jnp.int32)

        exact = bool(jnp.array_equal(idx, ref_idx))
        d_sel = jnp.take_along_axis(d2, idx, axis=1)
        d_ref = jnp.take_along_axis(d2, ref_idx, axis=1)
        close = bool(jnp.allclose(d_sel, d_ref, rtol=1e-5, atol=1e-5))
        assert exact or close, f"mismatch vs reference for config {(N, D, Q, K)}"

    print("KERNEL_OK")
</pallas_src>

<mosaic_0001>
module attributes {stable_mosaic.version = 11 : i64} {
  func.func @_knn_kernel(%arg0: i32, %arg1: i32, %arg2: memref<8x32xf32, #tpu.memory_space<vmem>>, %arg3: memref<1x256xf32, #tpu.memory_space<vmem>>, %arg4: memref<256x32xf32, #tpu.memory_space<vmem>>, %arg5: memref<8x5xi32, #tpu.memory_space<vmem>>, %arg6: memref<8x5xf32, #tpu.memory_space<vmem>>, %arg7: memref<8x5xi32, #tpu.memory_space<vmem>>) attributes {dimension_semantics = [#tpu.dimension_semantics<parallel>, #tpu.dimension_semantics<arbitrary>], iteration_bounds = array<i64: 1, 1>, scalar_prefetch = 0 : i64, scratch_operands = 2 : i64, tpu.core_type = #tpu.core_type<tc>, window_params = [{transform_indices = @transform_0, window_bounds = array<i64: 8, 32>}, {transform_indices = @transform_1, window_bounds = array<i64: 1, 256>}, {transform_indices = @transform_2, window_bounds = array<i64: 256, 32>}, {transform_indices = @transform_3, window_bounds = array<i64: 8, 5>}]} {
    %c0_i32 = arith.constant 0 : i32
    %0 = arith.cmpi eq, %arg1, %c0_i32 : i32
    %1 = arith.extui %0 : i1 to i32
    %c0_i32_0 = arith.constant 0 : i32
    %2 = arith.cmpi ne, %1, %c0_i32_0 : i32
    scf.if %2 {
      %cst_54 = arith.constant 1.000000e+30 : f32
      %138 = vector.broadcast %cst_54 : f32 to vector<8x5xf32>
      %c0_55 = arith.constant 0 : index
      %c0_56 = arith.constant 0 : index
      %139 = vector.load %arg6[%c0_55, %c0_56] : memref<8x5xf32, #tpu.memory_space<vmem>>, vector<8x5xf32>
      tpu.vector_store %arg6[%c0_55, %c0_56], %138 {strides = array<i32>} : memref<8x5xf32, #tpu.memory_space<vmem>>, vector<8x5xf32>,
      %c2147483647_i32_57 = arith.constant 2147483647 : i32
      %140 = vector.broadcast %c2147483647_i32_57 : i32 to vector<8x5xi32>
      %c0_58 = arith.constant 0 : index
      %c0_59 = arith.constant 0 : index
      %141 = vector.load %arg7[%c0_58, %c0_59] : memref<8x5xi32, #tpu.memory_space<vmem>>, vector<8x5xi32>
      tpu.vector_store %arg7[%c0_58, %c0_59], %140 {strides = array<i32>} : memref<8x5xi32, #tpu.memory_space<vmem>>, vector<8x5xi32>,
    } else {
    }
    %c0 = arith.constant 0 : index
    %c0_1 = arith.constant 0 : index
    %3 = vector.load %arg2[%c0, %c0_1] : memref<8x32xf32, #tpu.memory_space<vmem>>, vector<8x32xf32>
    %c0_2 = arith.constant 0 : index
    %c0_3 = arith.constant 0 : index
    %4 = vector.load %arg4[%c0_2, %c0_3] : memref<256x32xf32, #tpu.memory_space<vmem>>, vector<256x32xf32>
    %c0_4 = arith.constant 0 : index
    %c0_5 = arith.constant 0 : index
    %5 = vector.load %arg3[%c0_4, %c0_5] : memref<1x256xf32, #tpu.memory_space<vmem>>, vector<1x256xf32>
    %cst = arith.constant dense<0.000000e+00> : vector<8x256xf32>
    %6 = tpu.matmul %3, %4, %cst {dimension_numbers = #tpu.dot_dimension_numbers<[1], [1], [0], [0], [0, 0, 1, 0], [], []>} : vector<8x32xf32>, vector<256x32xf32>, vector<8x256xf32> -> vector<8x256xf32>
    %cst_6 = arith.constant 2.000000e+00 : f32
    %7 = vector.broadcast %cst_6 : f32 to vector<8x256xf32>
    %8 = arith.mulf %7, %6 : vector<8x256xf32>
    %9 = vector.broadcast %5 : vector<1x256xf32> to vector<8x256xf32>
    %10 = arith.subf %9, %8 : vector<8x256xf32>
    %11 = tpu.iota {dimensions = array<i32: 1>} : vector<8x256xi32>
    %c256_i32 = arith.constant 256 : i32
    %12 = arith.muli %arg1, %c256_i32 : i32
    %13 = vector.broadcast %12 : i32 to vector<8x256xi32>
    %14 = arith.addi %11, %13 : vector<8x256xi32>
    %cst_7 = arith.constant dense<0x7F800000> : vector<8xf32>
    %15 = vector.multi_reduction <minimumf>, %10, %cst_7 [1] : vector<8x256xf32> to vector<8xf32>
    %16 = vector.shape_cast %15 : vector<8xf32> to vector<8x1xf32>
    %17 = vector.broadcast %16 : vector<8x1xf32> to vector<8x256xf32>
    %18 = arith.cmpf oeq, %10, %17 : vector<8x256xf32>
    %c2147483647_i32 = arith.constant 2147483647 : i32
    %19 = vector.broadcast %c2147483647_i32 : i32 to vector<8x256xi32>
    %20 = arith.select %18, %14, %19 : vector<8x256xi1>, vector<8x256xi32>
    %cst_8 = arith.constant dense<2147483647> : vector<8xi32>
    %21 = vector.multi_reduction <minsi>, %20, %cst_8 [1] : vector<8x256xi32> to vector<8xi32>
    %22 = vector.shape_cast %21 : vector<8xi32> to vector<8x1xi32>
    %23 = vector.broadcast %22 : vector<8x1xi32> to vector<8x256xi32>
    %24 = arith.cmpi eq, %14, %23 : vector<8x256xi32>
    %cst_9 = arith.constant 1.000000e+30 : f32
    %25 = vector.broadcast %cst_9 : f32 to vector<8x256xf32>
    %26 = arith.select %24, %25, %10 : vector<8x256xi1>, vector<8x256xf32>
    %cst_10 = arith.constant dense<0x7F800000> : vector<8xf32>
    %27 = vector.multi_reduction <minimumf>, %26, %cst_10 [1] : vector<8x256xf32> to vector<8xf32>
    %28 = vector.shape_cast %27 : vector<8xf32> to vector<8x1xf32>
    %29 = vector.broadcast %28 : vector<8x1xf32> to vector<8x256xf32>
    %30 = arith.cmpf oeq, %26, %29 : vector<8x256xf32>
    %c2147483647_i32_11 = arith.constant 2147483647 : i32
    %31 = vector.broadcast %c2147483647_i32_11 : i32 to vector<8x256xi32>
    %32 = arith.select %30, %14, %31 : vector<8x256xi1>, vector<8x256xi32>
    %cst_12 = arith.constant dense<2147483647> : vector<8xi32>
    %33 = vector.multi_reduction <minsi>, %32, %cst_12 [1] : vector<8x256xi32> to vector<8xi32>
    %34 = vector.shape_cast %33 : vector<8xi32> to vector<8x1xi32>
    %35 = vector.broadcast %34 : vector<8x1xi32> to vector<8x256xi32>
    %36 = arith.cmpi eq, %14, %35 : vector<8x256xi32>
    %cst_13 = arith.constant 1.000000e+30 : f32
    %37 = vector.broadcast %cst_13 : f32 to vector<8x256xf32>
    %38 = arith.select %36, %37, %26 : vector<8x256xi1>, vector<8x256xf32>
    %cst_14 = arith.constant dense<0x7F800000> : vector<8xf32>
    %39 = vector.multi_reduction <minimumf>, %38, %cst_14 [1] : vector<8x256xf32> to vector<8xf32>
    %40 = vector.shape_cast %39 : vector<8xf32> to vector<8x1xf32>
    %41 = vector.broadcast %40 : vector<8x1xf32> to vector<8x256xf32>
    %42 = arith.cmpf oeq, %38, %41 : vector<8x256xf32>
    %c2147483647_i32_15 = arith.constant 2147483647 : i32
    %43 = vector.broadcast %c2147483647_i32_15 : i32 to vector<8x256xi32>
    %44 = arith.select %42, %14, %43 : vector<8x256xi1>, vector<8x256xi32>
    %cst_16 = arith.constant dense<2147483647> : vector<8xi32>
    %45 = vector.multi_reduction <minsi>, %44, %cst_16 [1] : vector<8x256xi32> to vector<8xi32>
    %46 = vector.shape_cast %45 : vector<8xi32> to vector<8x1xi32>
    %47 = vector.broadcast %46 : vector<8x1xi32> to vector<8x256xi32>
    %48 = arith.cmpi eq, %14, %47 : vector<8x256xi32>
    %cst_17 = arith.constant 1.000000e+30 : f32
    %49 = vector.broadcast %cst_17 : f32 to vector<8x256xf32>
    %50 = arith.select %48, %49, %38 : vector<8x256xi1>, vector<8x256xf32>
    %cst_18 = arith.constant dense<0x7F800000> : vector<8xf32>
    %51 = vector.multi_reduction <minimumf>, %50, %cst_18 [1] : vector<8x256xf32> to vector<8xf32>
    %52 = vector.shape_cast %51 : vector<8xf32> to vector<8x1xf32>
    %53 = vector.broadcast %52 : vector<8x1xf32> to vector<8x256xf32>
    %54 = arith.cmpf oeq, %50, %53 : vector<8x256xf32>
    %c2147483647_i32_19 = arith.constant 2147483647 : i32
    %55 = vector.broadcast %c2147483647_i32_19 : i32 to vector<8x256xi32>
    %56 = arith.select %54, %14, %55 : vector<8x256xi1>, vector<8x256xi32>
    %cst_20 = arith.constant dense<2147483647> : vector<8xi32>
    %57 = vector.multi_reduction <minsi>, %56, %cst_20 [1] : vector<8x256xi32> to vector<8xi32>
    %58 = vector.shape_cast %57 : vector<8xi32> to vector<8x1xi32>
    %59 = vector.broadcast %58 : vector<8x1xi32> to vector<8x256xi32>
    %60 = arith.cmpi eq, %14, %59 : vector<8x256xi32>
    %cst_21 = arith.constant 1.000000e+30 : f32
    %61 = vector.broadcast %cst_21 : f32 to vector<8x256xf32>
    %62 = arith.select %60, %61, %50 : vector<8x256xi1>, vector<8x256xf32>
    %cst_22 = arith.constant dense<0x7F800000> : vector<8xf32>
    %63 = vector.multi_reduction <minimumf>, %62, %cst_22 [1] : vector<8x256xf32> to vector<8xf32>
    %64 = vector.shape_cast %63 : vector<8xf32> to vector<8x1xf32>
    %65 = vector.broadcast %64 : vector<8x1xf32> to vector<8x256xf32>
    %66 = arith.cmpf oeq, %62, %65 : vector<8x256xf32>
    %c2147483647_i32_23 = arith.constant 2147483647 : i32
    %67 = vector.broadcast %c2147483647_i32_23 : i32 to vector<8x256xi32>
    %68 = arith.select %66, %14, %67 : vector<8x256xi1>, vector<8x256xi32>
    %cst_24 = arith.constant dense<2147483647> : vector<8xi32>
    %69 = vector.multi_reduction <minsi>, %68, %cst_24 [1] : vector<8x256xi32> to vector<8xi32>
    %70 = vector.shape_cast %69 : vector<8xi32> to vector<8x1xi32>
    %c0_25 = arith.constant 0 : index
    %c0_26 = arith.constant 0 : index
    %71 = vector.load %arg6[%c0_25, %c0_26] : memref<8x5xf32, #tpu.memory_space<vmem>>, vector<8x5xf32>
    %72 = tpu.concatenate %71, %16, %28, %40, %52, %64 in 1 : vector<8x5xf32>, vector<8x1xf32>, vector<8x1xf32>, vector<8x1xf32>, vector<8x1xf32>, vector<8x1xf32> -> vector<8x10xf32>
    %c0_27 = arith.constant 0 : index
    %c0_28 = arith.constant 0 : index
    %73 = vector.load %arg7[%c0_27, %c0_28] : memref<8x5xi32, #tpu.memory_space<vmem>>, vector<8x5xi32>
    %74 = tpu.concatenate %73, %22, %34, %46, %58, %70 in 1 : vector<8x5xi32>, vector<8x1xi32>, vector<8x1xi32>, vector<8x1xi32>, vector<8x1xi32>, vector<8x1xi32> -> vector<8x10xi32>
    %cst_29 = arith.constant dense<0x7F800000> : vector<8xf32>
    %75 = vector.multi_reduction <minimumf>, %72, %cst_29 [1] : vector<8x10xf32> to vector<8xf32>
    %76 = vector.shape_cast %75 : vector<8xf32> to vector<8x1xf32>
    %77 = vector.broadcast %76 : vector<8x1xf32> to vector<8x10xf32>
    %78 = arith.cmpf oeq, %72, %77 : vector<8x10xf32>
    %c2147483647_i32_30 = arith.constant 2147483647 : i32
    %79 = vector.broadcast %c2147483647_i32_30 : i32 to vector<8x10xi32>
    %80 = arith.select %78, %74, %79 : vector<8x10xi1>, vector<8x10xi32>
    %cst_31 = arith.constant dense<2147483647> : vector<8xi32>
    %81 = vector.multi_reduction <minsi>, %80, %cst_31 [1] : vector<8x10xi32> to vector<8xi32>
    %82 = vector.shape_cast %81 : vector<8xi32> to vector<8x1xi32>
    %83 = vector.broadcast %82 : vector<8x1xi32> to vector<8x10xi32>
    %84 = arith.cmpi eq, %74, %83 : vector<8x10xi32>
    %cst_32 = arith.constant 1.000000e+30 : f32
    %85 = vector.broadcast %cst_32 : f32 to vector<8x10xf32>
    %86 = arith.select %84, %85, %72 : vector<8x10xi1>, vector<8x10xf32>
    %cst_33 = arith.constant dense<0x7F800000> : vector<8xf32>
    %87 = vector.multi_reduction <minimumf>, %86, %cst_33 [1] : vector<8x10xf32> to vector<8xf32>
    %88 = vector.shape_cast %87 : vector<8xf32> to vector<8x1xf32>
    %89 = vector.broadcast %88 : vector<8x1xf32> to vector<8x10xf32>
    %90 = arith.cmpf oeq, %86, %89 : vector<8x10xf32>
    %c2147483647_i32_34 = arith.constant 2147483647 : i32
    %91 = vector.broadcast %c2147483647_i32_34 : i32 to vector<8x10xi32>
    %92 = arith.select %90, %74, %91 : vector<8x10xi1>, vector<8x10xi32>
    %cst_35 = arith.constant dense<2147483647> : vector<8xi32>
    %93 = vector.multi_reduction <minsi>, %92, %cst_35 [1] : vector<8x10xi32> to vector<8xi32>
    %94 = vector.shape_cast %93 : vector<8xi32> to vector<8x1xi32>
    %95 = vector.broadcast %94 : vector<8x1xi32> to vector<8x10xi32>
    %96 = arith.cmpi eq, %74, %95 : vector<8x10xi32>
    %cst_36 = arith.constant 1.000000e+30 : f32
    %97 = vector.broadcast %cst_36 : f32 to vector<8x10xf32>
    %98 = arith.select %96, %97, %86 : vector<8x10xi1>, vector<8x10xf32>
    %cst_37 = arith.constant dense<0x7F800000> : vector<8xf32>
    %99 = vector.multi_reduction <minimumf>, %98, %cst_37 [1] : vector<8x10xf32> to vector<8xf32>
    %100 = vector.shape_cast %99 : vector<8xf32> to vector<8x1xf32>
    %101 = vector.broadcast %100 : vector<8x1xf32> to vector<8x10xf32>
    %102 = arith.cmpf oeq, %98, %101 : vector<8x10xf32>
    %c2147483647_i32_38 = arith.constant 2147483647 : i32
    %103 = vector.broadcast %c2147483647_i32_38 : i32 to vector<8x10xi32>
    %104 = arith.select %102, %74, %103 : vector<8x10xi1>, vector<8x10xi32>
    %cst_39 = arith.constant dense<2147483647> : vector<8xi32>
    %105 = vector.multi_reduction <minsi>, %104, %cst_39 [1] : vector<8x10xi32> to vector<8xi32>
    %106 = vector.shape_cast %105 : vector<8xi32> to vector<8x1xi32>
    %107 = vector.broadcast %106 : vector<8x1xi32> to vector<8x10xi32>
    %108 = arith.cmpi eq, %74, %107 : vector<8x10xi32>
    %cst_40 = arith.constant 1.000000e+30 : f32
    %109 = vector.broadcast %cst_40 : f32 to vector<8x10xf32>
    %110 = arith.select %108, %109, %98 : vector<8x10xi1>, vector<8x10xf32>
    %cst_41 = arith.constant dense<0x7F800000> : vector<8xf32>
    %111 = vector.multi_reduction <minimumf>, %110, %cst_41 [1] : vector<8x10xf32> to vector<8xf32>
    %112 = vector.shape_cast %111 : vector<8xf32> to vector<8x1xf32>
    %113 = vector.broadcast %112 : vector<8x1xf32> to vector<8x10xf32>
    %114 = arith.cmpf oeq, %110, %113 : vector<8x10xf32>
    %c2147483647_i32_42 = arith.constant 2147483647 : i32
    %115 = vector.broadcast %c2147483647_i32_42 : i32 to vector<8x10xi32>
    %116 = arith.select %114, %74, %115 : vector<8x10xi1>, vector<8x10xi32>
    %cst_43 = arith.constant dense<2147483647> : vector<8xi32>
    %117 = vector.multi_reduction <minsi>, %116, %cst_43 [1] : vector<8x10xi32> to vector<8xi32>
    %118 = vector.shape_cast %117 : vector<8xi32> to vector<8x1xi32>
    %119 = vector.broadcast %118 : vector<8x1xi32> to vector<8x10xi32>
    %120 = arith.cmpi eq, %74, %119 : vector<8x10xi32>
    %cst_44 = arith.constant 1.000000e+30 : f32
    %121 = vector.broadcast %cst_44 : f32 to vector<8x10xf32>
    %122 = arith.select %120, %121, %110 : vector<8x10xi1>, vector<8x10xf32>
    %cst_45 = arith.constant dense<0x7F800000> : vector<8xf32>
    %123 = vector.multi_reduction <minimumf>, %122, %cst_45 [1] : vector<8x10xf32> to vector<8xf32>
    %124 = vector.shape_cast %123 : vector<8xf32> to vector<8x1xf32>
    %125 = vector.broadcast %124 : vector<8x1xf32> to vector<8x10xf32>
    %126 = arith.cmpf oeq, %122, %125 : vector<8x10xf32>
    %c2147483647_i32_46 = arith.constant 2147483647 : i32
    %127 = vector.broadcast %c2147483647_i32_46 : i32 to vector<8x10xi32>
    %128 = arith.select %126, %74, %127 : vector<8x10xi1>, vector<8x10xi32>
    %cst_47 = arith.constant dense<2147483647> : vector<8xi32>
    %129 = vector.multi_reduction <minsi>, %128, %cst_47 [1] : vector<8x10xi32> to vector<8xi32>
    %130 = vector.shape_cast %129 : vector<8xi32> to vector<8x1xi32>
    %131 = tpu.concatenate %76, %88, %100, %112, %124 in 1 : vector<8x1xf32>, vector<8x1xf32>, vector<8x1xf32>, vector<8x1xf32>, vector<8x1xf32> -> vector<8x5xf32>
    %c0_48 = arith.constant 0 : index
    %c0_49 = arith.constant 0 : index
    %132 = vector.load %arg6[%c0_48, %c0_49] : memref<8x5xf32, #tpu.memory_space<vmem>>, vector<8x5xf32>
    tpu.vector_store %arg6[%c0_48, %c0_49], %131 {strides = array<i32>} : memref<8x5xf32, #tpu.memory_space<vmem>>, vector<8x5xf32>,
    %133 = tpu.concatenate %82, %94, %106, %118, %130 in 1 : vector<8x1xi32>, vector<8x1xi32>, vector<8x1xi32>, vector<8x1xi32>, vector<8x1xi32> -> vector<8x5xi32>
    %c0_50 = arith.constant 0 : index
    %c0_51 = arith.constant 0 : index
    %134 = vector.load %arg7[%c0_50, %c0_51] : memref<8x5xi32, #tpu.memory_space<vmem>>, vector<8x5xi32>
    tpu.vector_store %arg7[%c0_50, %c0_51], %133 {strides = array<i32>} : memref<8x5xi32, #tpu.memory_space<vmem>>, vector<8x5xi32>,
    %c0_i32_52 = arith.constant 0 : i32
    %135 = arith.cmpi eq, %arg1, %c0_i32_52 : i32
    %136 = arith.extui %135 : i1 to i32
    %c0_i32_53 = arith.constant 0 : i32
    %137 = arith.cmpi ne, %136, %c0_i32_53 : i32
    scf.if %137 {
      %c0_54 = arith.constant 0 : index
      %c0_55 = arith.constant 0 : index
      %138 = vector.load %arg7[%c0_54, %c0_55] : memref<8x5xi32, #tpu.memory_space<vmem>>, vector<8x5xi32>
      %c0_56 = arith.constant 0 : index
      %c0_57 = arith.constant 0 : index
      %139 = vector.load %arg5[%c0_56, %c0_57] : memref<8x5xi32, #tpu.memory_space<vmem>>, vector<8x5xi32>
      tpu.vector_store %arg5[%c0_56, %c0_57], %138 {strides = array<i32>} : memref<8x5xi32, #tpu.memory_space<vmem>>, vector<8x5xi32>,
    } else {
    }
    return
  }
  func.func @transform_0(%arg0: i32, %arg1: i32) -> (i32, i32) {
    %c0_i32 = arith.constant 0 : i32
    %c0_i32_0 = arith.constant 0 : i32
    return %arg0, %c0_i32 : i32, i32
  }
  func.func @transform_1(%arg0: i32, %arg1: i32) -> (i32, i32) {
    %c0_i32 = arith.constant 0 : i32
    %c0_i32_0 = arith.constant 0 : i32
    return %c0_i32, %arg1 : i32, i32
  }
  func.func @transform_2(%arg0: i32, %arg1: i32) -> (i32, i32) {
    %c0_i32 = arith.constant 0 : i32
    %c0_i32_0 = arith.constant 0 : i32
    return %arg1, %c0_i32 : i32, i32
  }
  func.func @transform_3(%arg0: i32, %arg1: i32) -> (i32, i32) {
    %c0_i32 = arith.constant 0 : i32
    %c0_i32_0 = arith.constant 0 : i32
    return %arg0, %c0_i32 : i32, i32
  }
}

</mosaic_0001>

<llo_original>
// kernel: tpu_custom_call.1
$region0: #{tpu_custom_call.1}
  #allocation0 [shape = 'u32[]', space=smem, size = 0x4, offset = 0x4, fixed_abs, tag = 'smem constant byte address 0x4 - core index']
  #allocation1 [shape = 'u32[144,128]{1,0:T(1,128)}', space=vmem, size = 0x12000, scoped, tag = 'internal scratch']
  #allocation2 [shape = 'f32[8,5]{1,0:T(8,128)}', space=vmem, size = 0x1000, scoped, tag = 'scratch operand']
  #allocation3 [shape = 's32[8,5]{1,0:T(8,128)}', space=vmem, size = 0x1000, scoped, tag = 'scratch operand']
  %s0 = inlined_call_operand.vmem [shape: f32[8,32], index: 0, kind: input, shape index: {}]
  %s1 = inlined_call_operand.vmem [shape: f32[1,256], index: 1, kind: input, shape index: {}]
  %s2 = inlined_call_operand.vmem [shape: f32[256,32], index: 2, kind: input, shape index: {}]
  %s3 = inlined_call_operand.hbm [shape: s32[8,5], index: 3, kind: output, shape index: {}]
  %s4 = sld [smem:[#allocation0]]
  $region30: #{tpu_custom_call.1} parent=0
    _
  %s6 = ssub.s32 1, %s4
  %s7 = scalar_select 0, %s6, %s4
  $region1: #{tpu_custom_call.1} parent=0
    #allocation4 [shape = 'u8[4096]{0}', space=vmem, size = 0x1000, scoped, tag = 'output window, operand 0, single buffered']
    #allocation5 [shape = 's32[1]{0}', space=sflag, size = 0x4, scoped, tag = 'scoped memory for tpu_custom_call.1']
    %8 = vsyncpa [#allocation5], 0
    // Predicated region
    $region2: #{tpu_custom_call.1} parent=1 // pred_check
      _
    $region3: #{tpu_custom_call.1} parent=1 // pred_check_branch
      %10 = sbr.rel (0) target = $region5
    $region4: #{tpu_custom_call.1} parent=1 // pred_region
      _
    $region5: #{tpu_custom_call.1} parent=1 // pred_fallthru
      _
    // Predicated region
    $region6: #{tpu_custom_call.1} parent=1 // pred_check
      _
    $region7: #{tpu_custom_call.1} parent=1 // pred_check_branch
      %12 = sbr.rel (0) target = $region9
    $region8: #{tpu_custom_call.1} parent=1 // pred_region
      _
    $region9: #{tpu_custom_call.1} parent=1 // pred_fallthru
      _
    // Predicated region
    $region10: #{tpu_custom_call.1} parent=1 // pred_check
      _
    $region11: #{tpu_custom_call.1} parent=1 // pred_check_branch
      %14 = sbr.rel (0) target = $region13
    $region12: #{tpu_custom_call.1} parent=1 // pred_region
      _
    $region13: #{tpu_custom_call.1} parent=1 // pred_fallthru
      _
    %p15 = scmp.eq.s32.totalorder 0, 0
    // Predicated region
    $region14: #{tpu_custom_call.1} parent=1 // pred_check
      %p16 = pneg %p15
    $region15: #{tpu_custom_call.1} parent=1 // pred_check_branch
      %18 = sbr.rel (%p16) target = $region17
    $region16: #{tpu_custom_call.1} parent=1 // pred_region
      %vm19 = vcmask 39936
      %20 = vst.msk [vmem:[#allocation2] sm:$0xff] %vm19, 1e+30
      %21 = vst.msk [vmem:[#allocation3] sm:$0xff] %vm19, 2147483647
    $region17: #{tpu_custom_call.1} parent=1 // pred_fallthru
      _
    %v22 = vld [vmem:[%s0] sm:$0xff]
    %v23 = vld [vmem:[%s2] sm:$0xff]
    %v24 = vld [vmem:[%s2 + $0x8] sm:$0xff]
    %v25 = vld [vmem:[%s2 + $0x10] sm:$0xff]
    %v26 = vld [vmem:[%s2 + $0x18] sm:$0xff]
    %v27 = vld [vmem:[%s2 + $0x20] sm:$0xff]
    %v28 = vld [vmem:[%s2 + $0x28] sm:$0xff]
    %v29 = vld [vmem:[%s2 + $0x30] sm:$0xff]
    %v30 = vld [vmem:[%s2 + $0x38] sm:$0xff]
    %v31 = vld [vmem:[%s2 + $0x40] sm:$0xff]
    %v32 = vld [vmem:[%s2 + $0x48] sm:$0xff]
    %v33 = vld [vmem:[%s2 + $0x50] sm:$0xff]
    %v34 = vld [vmem:[%s2 + $0x58] sm:$0xff]
    %v35 = vld [vmem:[%s2 + $0x60] sm:$0xff]
    %v36 = vld [vmem:[%s2 + $0x68] sm:$0xff]
    %v37 = vld [vmem:[%s2 + $0x70] sm:$0xff]
    %v38 = vld [vmem:[%s2 + $0x78] sm:$0xff]
    %v39 = vld [vmem:[%s2 + $0x80] sm:$0xff]
    %v40 = vld [vmem:[%s2 + $0x88] sm:$0xff]
    %v41 = vld [vmem:[%s2 + $0x90] sm:$0xff]
    %v42 = vld [vmem:[%s2 + $0x98] sm:$0xff]
    %v43 = vld [vmem:[%s2 + $0xa0] sm:$0xff]
    %v44 = vld [vmem:[%s2 + $0xa8] sm:$0xff]
    %v45 = vld [vmem:[%s2 + $0xb0] sm:$0xff]
    %v46 = vld [vmem:[%s2 + $0xb8] sm:$0xff]
    %v47 = vld [vmem:[%s2 + $0xc0] sm:$0xff]
    %v48 = vld [vmem:[%s2 + $0xc8] sm:$0xff]
    %v49 = vld [vmem:[%s2 + $0xd0] sm:$0xff]
    %v50 = vld [vmem:[%s2 + $0xd8] sm:$0xff]
    %v51 = vld [vmem:[%s2 + $0xe0] sm:$0xff]
    %v52 = vld [vmem:[%s2 + $0xe8] sm:$0xff]
    %v53 = vld [vmem:[%s2 + $0xf0] sm:$0xff]
    %v54 = vld [vmem:[%s2 + $0xf8] sm:$0xff]
    %v55 = vld [vmem:[%s1] sm:$0x3]
    %vm56 = vcmask 261120
    %v58 = vsel %vm56, %v22, 0
    %v61 = vsel %vm56, %v23, 0
    %v64 = vsel %vm56, %v24, 0
    %v67 = vsel %vm56, %v25, 0
    %v70 = vsel %vm56, %v26, 0
    %v73 = vsel %vm56, %v27, 0
    %v76 = vsel %vm56, %v28, 0
    %v79 = vsel %vm56, %v29, 0
    %v82 = vsel %vm56, %v30, 0
    %v85 = vsel %vm56, %v31, 0
    %v88 = vsel %vm56, %v32, 0
    %v91 = vsel %vm56, %v33, 0
    %v94 = vsel %vm56, %v34, 0
    %v97 = vsel %vm56, %v35, 0
    %v100 = vsel %vm56, %v36, 0
    %v103 = vsel %vm56, %v37, 0
    %v106 = vsel %vm56, %v38, 0
    %v109 = vsel %vm56, %v39, 0
    %v112 = vsel %vm56, %v40, 0
    %v115 = vsel %vm56, %v41, 0
    %v118 = vsel %vm56, %v42, 0
    %v121 = vsel %vm56, %v43, 0
    %v124 = vsel %vm56, %v44, 0
    %v127 = vsel %vm56, %v45, 0
    %v130 = vsel %vm56, %v46, 0
    %v133 = vsel %vm56, %v47, 0
    %v136 = vsel %vm56, %v48, 0
    %v139 = vsel %vm56, %v49, 0
    %v142 = vsel %vm56, %v50, 0
    %v145 = vsel %vm56, %v51, 0
    %v148 = vsel %vm56, %v52, 0
    %v151 = vsel %vm56, %v53, 0
    %v154 = vsel %vm56, %v54, 0
    %156 = vmatprep.subr.mxu0 0.0
    %157 = vmatpush1.xpose.msra.mxu0 %v106
    %158 = vmatprep.subr.mxu0 0.0
    %159 = vmatpush1.xpose.msra.mxu0 %v103
    %160 = vmatprep.subr.mxu0 0.0
    %161 = vmatpush1.xpose.msra.mxu0 %v100
    %162 = vmatprep.subr.mxu0 0.0
    %163 = vmatpush1.xpose.msra.mxu0 %v97
    %164 = vmatprep.subr.mxu0 0.0
    %165 = vmatpush1.xpose.msra.mxu0 %v94
    %166 = vmatprep.subr.mxu0 0.0
    %167 = vmatpush1.xpose.msra.mxu0 %v91
    %168 = vmatprep.subr.mxu0 0.0
    %169 = vmatpush1.xpose.msra.mxu0 %v88
    %170 = vmatprep.subr.mxu0 0.0
    %171 = vmatpush1.xpose.msra.mxu0 %v85
    %172 = vmatprep.subr.mxu0 0.0
    %173 = vmatpush1.xpose.msra.mxu0 %v82
    %174 = vmatprep.subr.mxu0 0.0
    %175 = vmatpush1.xpose.msra.mxu0 %v79
    %176 = vmatprep.subr.mxu0 0.0
    %177 = vmatpush1.xpose.msra.mxu0 %v76
    %178 = vmatprep.subr.mxu0 0.0
    %179 = vmatpush1.xpose.msra.mxu0 %v73
    %180 = vmatprep.subr.mxu0 0.0
    %181 = vmatpush1.xpose.msra.mxu0 %v70
    %182 = vmatprep.subr.mxu0 0.0
    %183 = vmatpush1.xpose.msra.mxu0 %v67
    %184 = vmatprep.subr.mxu0 0.0
    %185 = vmatpush1.xpose.msra.mxu0 %v64
    %186 = vmatprep.subr.mxu0 0.0
    %187 = vmatpush1.xpose.msra.mxu0 %v61
    %188 = vmatprep.subr.mxu0 0.0
    %189 = vmatpush2.xpose.msra.mxu0 %v154
    %190 = vmatprep.subr.mxu0 0.0
    %191 = vmatpush2.xpose.msra.mxu0 %v151
    %192 = vmatprep.subr.mxu0 0.0
    %193 = vmatpush2.xpose.msra.mxu0 %v148
    %194 = vmatprep.subr.mxu0 0.0
    %195 = vmatpush2.xpose.msra.mxu0 %v145
    %196 = vmatprep.subr.mxu0 0.0
    %197 = vmatpush2.xpose.msra.mxu0 %v142
    %198 = vmatprep.subr.mxu0 0.0
    %199 = vmatpush2.xpose.msra.mxu0 %v139
    %200 = vmatprep.subr.mxu0 0.0
    %201 = vmatpush2.xpose.msra.mxu0 %v136
    %202 = vmatprep.subr.mxu0 0.0
    %203 = vmatpush2.xpose.msra.mxu0 %v133
    %204 = vmatprep.subr.mxu0 0.0
    %205 = vmatpush2.xpose.msra.mxu0 %v130
    %206 = vmatprep.subr.mxu0 0.0
    %207 = vmatpush2.xpose.msra.mxu0 %v127
    %208 = vmatprep.subr.mxu0 0.0
    %209 = vmatpush2.xpose.msra.mxu0 %v124
    %210 = vmatprep.subr.mxu0 0.0
    %211 = vmatpush2.xpose.msra.mxu0 %v121
    %212 = vmatprep.subr.mxu0 0.0
    %213 = vmatpush2.xpose.msra.mxu0 %v118
    %214 = vmatprep.subr.mxu0 0.0
    %215 = vmatpush2.xpose.msra.mxu0 %v115
    %216 = vmatprep.subr.mxu0 0.0
    %217 = vmatpush2.xpose.msra.mxu0 %v112
    %218 = vmatprep.subr.mxu0 0.0
    %219 = vmatpush2.xpose.msra.mxu0 %v109
    %220 = vmatprep.mubr.f32.mxu0 0.0
    %221 = vmatmul.mubr.f32.gmra.mxu0 %v58
    %v222 = vpop.f32.mrf.mxu0
    %v223 = vadd.f32 0.0, %v222
    %v224 = vpop.f32.mrf.mxu0
    %v225 = vadd.f32 0.0, %v224
    %226 = vdwg.mxu0
    %v227 = vmul.f32 %v223, 2.0
    %v228 = vmul.f32 %v225, 2.0
    %v230 = vlaneseq
    %v231 = vshrl.u32 %v230, 7
    %v232 = vsub.s32 0, %v231
    %v233 = vrot.slane %v55, %v232
    %v234 = vlaneseq
    %v235 = vshrl.u32 %v234, 7
    %v236 = vsub.s32 1, %v235
    %v237 = vrot.slane %v55, %v236
    %v240 = vsub.f32 %v233, %v227
    %v241 = vsub.f32 %v237, %v228
    %v242 = vlaneseq
    %v243 = vand.u32 %v242, 127
    %v244 = vadd.s32 %v243, 128
    %s245 = smul.u32 0, 256
    %v246 = vstv %s245
    %v247 = vadd.s32 %v243, %v246
    %v248 = vadd.s32 %v244, %v246
    %v249 = vmin.f32 %v240, %v241
    %250 = vmin.xlane.f32.xlu0 %v249
    %v251 = vpop.xlane.xlu0 %250
    %vm252 = vcmp.eq.f32.partialorder %v240, %v251
    %vm253 = vcmp.eq.f32.partialorder %v241, %v251
    %v254 = vsel %vm252, %v247, 2147483647
    %v255 = vsel %vm253, %v248, 2147483647
    %vm256 = vcmp.lt.s32.totalorder %v254, %v255
    %v257 = vsel %vm256, %v254, %v255
    %v258 = vand.u32 %v257, 65535
    %v259 = vshra.s32 %v257, 16
    %v260 = vcvt.s32.f32 %v258
    %v261 = vcvt.s32.f32 %v259
    %262 = vmin.xlane.f32.xlu0 %v261
    %v263 = vpop.xlane.xlu0 %262
    %vm264 = vcmp.eq.f32.partialorder %v261, %v263
    %v265 = vsel %vm264, %v260, inf
    %266 = vmin.xlane.f32.xlu0 %v265
    %v267 = vpop.xlane.xlu0 %266
    %v268 = vcvt.f32.s32 %v267
    %v269 = vcvt.f32.s32 %v263
    %v270 = vshll.u32 %v269, 16
    %v271 = vadd.s32 %v270, %v268
    %vm272 = vcmp.eq.s32.totalorder %v247, %v271
    %vm273 = vcmp.eq.s32.totalorder %v248, %v271
    %v274 = vsel %vm272, 1e+30, %v240
    %v275 = vsel %vm273, 1e+30, %v241
    %v276 = vmin.f32 %v274, %v275
    %277 = vmin.xlane.f32.xlu0 %v276
    %v278 = vpop.xlane.xlu0 %277
    %vm279 = vcmp.eq.f32.partialorder %v274, %v278
    %vm280 = vcmp.eq.f32.partialorder %v275, %v278
    %v281 = vsel %vm279, %v247, 2147483647
    %v282 = vsel %vm280, %v248, 2147483647
    %vm283 = vcmp.lt.s32.totalorder %v281, %v282
    %v284 = vsel %vm283, %v281, %v282
    %v285 = vand.u32 %v284, 65535
    %v286 = vshra.s32 %v284, 16
    %v287 = vcvt.s32.f32 %v285
    %v288 = vcvt.s32.f32 %v286
    %289 = vmin.xlane.f32.xlu0 %v288
    %v290 = vpop.xlane.xlu0 %289
    %vm291 = vcmp.eq.f32.partialorder %v288, %v290
    %v292 = vsel %vm291, %v287, inf
    %293 = vmin.xlane.f32.xlu0 %v292
    %v294 = vpop.xlane.xlu0 %293
    %v295 = vcvt.f32.s32 %v294
    %v296 = vcvt.f32.s32 %v290
    %v297 = vshll.u32 %v296, 16
    %v298 = vadd.s32 %v297, %v295
    %vm299 = vcmp.eq.s32.totalorder %v247, %v298
    %vm300 = vcmp.eq.s32.totalorder %v248, %v298
    %v301 = vsel %vm299, 1e+30, %v274
    %v302 = vsel %vm300, 1e+30, %v275
    %v303 = vmin.f32 %v301, %v302
    %304 = vmin.xlane.f32.xlu0 %v303
    %v305 = vpop.xlane.xlu0 %304
    %vm306 = vcmp.eq.f32.partialorder %v301, %v305
    %vm307 = vcmp.eq.f32.partialorder %v302, %v305
    %v308 = vsel %vm306, %v247, 2147483647
    %v309 = vsel %vm307, %v248, 2147483647
    %vm310 = vcmp.lt.s32.totalorder %v308, %v309
    %v311 = vsel %vm310, %v308, %v309
    %v312 = vand.u32 %v311, 65535
    %v313 = vshra.s32 %v311, 16
    %v314 = vcvt.s32.f32 %v312
    %v315 = vcvt.s32.f32 %v313
    %316 = vmin.xlane.f32.xlu0 %v315
    %v317 = vpop.xlane.xlu0 %316
    %vm318 = vcmp.eq.f32.partialorder %v315, %v317
    %v319 = vsel %vm318, %v314, inf
    %320 = vmin.xlane.f32.xlu0 %v319
    %v321 = vpop.xlane.xlu0 %320
    %v322 = vcvt.f32.s32 %v321
    %v323 = vcvt.f32.s32 %v317
    %v324 = vshll.u32 %v323, 16
    %v325 = vadd.s32 %v324, %v322
    %vm326 = vcmp.eq.s32.totalorder %v247, %v325
    %vm327 = vcmp.eq.s32.totalorder %v248, %v325
    %v328 = vsel %vm326, 1e+30, %v301
    %v329 = vsel %vm327, 1e+30, %v302
    %v330 = vmin.f32 %v328, %v329
    %331 = vmin.xlane.f32.xlu0 %v330
    %v332 = vpop.xlane.xlu0 %331
    %vm333 = vcmp.eq.f32.partialorder %v328, %v332
    %vm334 = vcmp.eq.f32.partialorder %v329, %v332
    %v335 = vsel %vm333, %v247, 2147483647
    %v336 = vsel %vm334, %v248, 2147483647
    %vm337 = vcmp.lt.s32.totalorder %v335, %v336
    %v338 = vsel %vm337, %v335, %v336
    %v339 = vand.u32 %v338, 65535
    %v340 = vshra.s32 %v338, 16
    %v341 = vcvt.s32.f32 %v339
    %v342 = vcvt.s32.f32 %v340
    %343 = vmin.xlane.f32.xlu0 %v342
    %v344 = vpop.xlane.xlu0 %343
    %vm345 = vcmp.eq.f32.partialorder %v342, %v344
    %v346 = vsel %vm345, %v341, inf
    %347 = vmin.xlane.f32.xlu0 %v346
    %v348 = vpop.xlane.xlu0 %347
    %v349 = vcvt.f32.s32 %v348
    %v350 = vcvt.f32.s32 %v344
    %v351 = vshll.u32 %v350, 16
    %v352 = vadd.s32 %v351, %v349
    %vm353 = vcmp.eq.s32.totalorder %v247, %v352
    %vm354 = vcmp.eq.s32.totalorder %v248, %v352
    %v355 = vsel %vm353, 1e+30, %v328
    %v356 = vsel %vm354, 1e+30, %v329
    %v357 = vmin.f32 %v355, %v356
    %358 = vmin.xlane.f32.xlu0 %v357
    %v359 = vpop.xlane.xlu0 %358
    %vm360 = vcmp.eq.f32.partialorder %v355, %v359
    %vm361 = vcmp.eq.f32.partialorder %v356, %v359
    %v362 = vsel %vm360, %v247, 2147483647
    %v363 = vsel %vm361, %v248, 2147483647
    %vm364 = vcmp.lt.s32.totalorder %v362, %v363
    %v365 = vsel %vm364, %v362, %v363
    %v366 = vand.u32 %v365, 65535
    %v367 = vshra.s32 %v365, 16
    %v368 = vcvt.s32.f32 %v366
    %v369 = vcvt.s32.f32 %v367
    %370 = vmin.xlane.f32.xlu0 %v369
    %v371 = vpop.xlane.xlu0 %370
    %vm372 = vcmp.eq.f32.partialorder %v369, %v371
    %v373 = vsel %vm372, %v368, inf
    %374 = vmin.xlane.f32.xlu0 %v373
    %v375 = vpop.xlane.xlu0 %374
    %v376 = vcvt.f32.s32 %v375
    %v377 = vcvt.f32.s32 %v371
    %v378 = vshll.u32 %v377, 16
    %v379 = vadd.s32 %v378, %v376
    %v380 = vld [vmem:[#allocation2] sm:$0xff]
    %vm381 = vcmask 39936
    %v382 = vsel %vm381, %v380, %v251
    %vm383 = vcmask 48128
    %v384 = vsel %vm383, %v382, %v278
    %vm385 = vcmask 56320
    %v386 = vsel %vm385, %v384, %v305
    %vm387 = vcmask 64512
    %v388 = vsel %vm387, %v386, %v332
    %vm389 = vcmask 72704
    %v390 = vsel %vm389, %v388, %v359
    %v391 = vld [vmem:[#allocation3] sm:$0xff]
    %v392 = vsel %vm381, %v391, %v271
    %v393 = vsel %vm383, %v392, %v298
    %v394 = vsel %vm385, %v393, %v325
    %v395 = vsel %vm387, %v394, %v352
    %v396 = vsel %vm389, %v395, %v379
    %vm397 = vcmask 80896
    %v398 = vsel %vm397, %v390, inf
    %399 = vmin.xlane.f32.xlu0 %v398
    %v400 = vpop.xlane.xlu0 %399
    %vm401 = vcmp.eq.f32.partialorder %v390, %v400
    %v402 = vsel %vm401, %v396, 2147483647
    %v403 = vsel %vm397, %v402, 2147483647
    %v404 = vand.u32 %v403, 65535
    %v405 = vshra.s32 %v403, 16
    %v406 = vcvt.s32.f32 %v404
    %v407 = vcvt.s32.f32 %v405
    %408 = vmin.xlane.f32.xlu0 %v407
    %v409 = vpop.xlane.xlu0 %408
    %vm410 = vcmp.eq.f32.partialorder %v407, %v409
    %v411 = vsel %vm410, %v406, inf
    %412 = vmin.xlane.f32.xlu0 %v411
    %v413 = vpop.xlane.xlu0 %412
    %v414 = vcvt.f32.s32 %v413
    %v415 = vcvt.f32.s32 %v409
    %v416 = vshll.u32 %v415, 16
    %v417 = vadd.s32 %v416, %v414
    %vm418 = vcmp.eq.s32.totalorder %v396, %v417
    %v419 = vsel %vm418, 1e+30, %v390
    %v420 = vsel %vm397, %v419, inf
    %421 = vmin.xlane.f32.xlu0 %v420
    %v422 = vpop.xlane.xlu0 %421
    %vm423 = vcmp.eq.f32.partialorder %v419, %v422
    %v424 = vsel %vm423, %v396, 2147483647
    %v425 = vsel %vm397, %v424, 2147483647
    %v426 = vand.u32 %v425, 65535
    %v427 = vshra.s32 %v425, 16
    %v428 = vcvt.s32.f32 %v426
    %v429 = vcvt.s32.f32 %v427
    %430 = vmin.xlane.f32.xlu0 %v429
    %v431 = vpop.xlane.xlu0 %430
    %vm432 = vcmp.eq.f32.partialorder %v429, %v431
    %v433 = vsel %vm432, %v428, inf
    %434 = vmin.xlane.f32.xlu0 %v433
    %v435 = vpop.xlane.xlu0 %434
    %v436 = vcvt.f32.s32 %v435
    %v437 = vcvt.f32.s32 %v431
    %v438 = vshll.u32 %v437, 16
    %v439 = vadd.s32 %v438, %v436
    %vm440 = vcmp.eq.s32.totalorder %v396, %v439
    %v441 = vsel %vm440, 1e+30, %v419
    %v442 = vsel %vm397, %v441, inf
    %443 = vmin.xlane.f32.xlu0 %v442
    %v444 = vpop.xlane.xlu0 %443
    %vm445 = vcmp.eq.f32.partialorder %v441, %v444
    %v446 = vsel %vm445, %v396, 2147483647
    %v447 = vsel %vm397, %v446, 2147483647
    %v448 = vand.u32 %v447, 65535
    %v449 = vshra.s32 %v447, 16
    %v450 = vcvt.s32.f32 %v448
    %v451 = vcvt.s32.f32 %v449
    %452 = vmin.xlane.f32.xlu0 %v451
    %v453 = vpop.xlane.xlu0 %452
    %vm454 = vcmp.eq.f32.partialorder %v451, %v453
    %v455 = vsel %vm454, %v450, inf
    %456 = vmin.xlane.f32.xlu0 %v455
    %v457 = vpop.xlane.xlu0 %456
    %v458 = vcvt.f32.s32 %v457
    %v459 = vcvt.f32.s32 %v453
    %v460 = vshll.u32 %v459, 16
    %v461 = vadd.s32 %v460, %v458
    %vm462 = vcmp.eq.s32.totalorder %v396, %v461
    %v463 = vsel %vm462, 1e+30, %v441
    %v464 = vsel %vm397, %v463, inf
    %465 = vmin.xlane.f32.xlu0 %v464
    %v466 = vpop.xlane.xlu0 %465
    %vm467 = vcmp.eq.f32.partialorder %v463, %v466
    %v468 = vsel %vm467, %v396, 2147483647
    %v469 = vsel %vm397, %v468, 2147483647
    %v470 = vand.u32 %v469, 65535
    %v471 = vshra.s32 %v469, 16
    %v472 = vcvt.s32.f32 %v470
    %v473 = vcvt.s32.f32 %v471
    %474 = vmin.xlane.f32.xlu0 %v473
    %v475 = vpop.xlane.xlu0 %474
    %vm476 = vcmp.eq.f32.partialorder %v473, %v475
    %v477 = vsel %vm476, %v472, inf
    %478 = vmin.xlane.f32.xlu0 %v477
    %v479 = vpop.xlane.xlu0 %478
    %v480 = vcvt.f32.s32 %v479
    %v481 = vcvt.f32.s32 %v475
    %v482 = vshll.u32 %v481, 16
    %v483 = vadd.s32 %v482, %v480
    %vm484 = vcmp.eq.s32.totalorder %v396, %v483
    %v485 = vsel %vm484, 1e+30, %v463
    %v486 = vsel %vm397, %v485, inf
    %487 = vmin.xlane.f32.xlu0 %v486
    %v488 = vpop.xlane.xlu0 %487
    %vm489 = vcmp.eq.f32.partialorder %v485, %v488
    %v490 = vsel %vm489, %v396, 2147483647
    %v491 = vsel %vm397, %v490, 2147483647
    %v492 = vand.u32 %v491, 65535
    %v493 = vshra.s32 %v491, 16
    %v494 = vcvt.s32.f32 %v492
    %v495 = vcvt.s32.f32 %v493
    %496 = vmin.xlane.f32.xlu0 %v495
    %v497 = vpop.xlane.xlu0 %496
    %vm498 = vcmp.eq.f32.partialorder %v495, %v497
    %v499 = vsel %vm498, %v494, inf
    %500 = vmin.xlane.f32.xlu0 %v499
    %v501 = vpop.xlane.xlu0 %500
    %v502 = vcvt.f32.s32 %v501
    %v503 = vcvt.f32.s32 %v497
    %v504 = vshll.u32 %v503, 16
    %v505 = vadd.s32 %v504, %v502
    %vm506 = vcmask 7168
    %v507 = vsel %vm506, %v400, %v422
    %vm508 = vcmask 15360
    %v509 = vsel %vm508, %v507, %v444
    %vm510 = vcmask 23552
    %v511 = vsel %vm510, %v509, %v466
    %vm512 = vcmask 31744
    %v513 = vsel %vm512, %v511, %v488
    %514 = vst.msk [vmem:[#allocation2] sm:$0xff] %vm381, %v513
    %v515 = vsel %vm506, %v417, %v439
    %v516 = vsel %vm508, %v515, %v461
    %v517 = vsel %vm510, %v516, %v483
    %v518 = vsel %vm512, %v517, %v505
    %519 = vst.msk [vmem:[#allocation3] sm:$0xff] %vm381, %v518
    // Predicated region
    $region18: #{tpu_custom_call.1} parent=1 // pred_check
      %p520 = pneg %p15
    $region19: #{tpu_custom_call.1} parent=1 // pred_check_branch
      %522 = sbr.rel (%p520) target = $region21
    $region20: #{tpu_custom_call.1} parent=1 // pred_region
      %v523 = vld [vmem:[#allocation3] sm:$0xff]
      %524 = vst.msk [vmem:[#allocation4] sm:$0xff] %vm381, %v523
    $region21: #{tpu_custom_call.1} parent=1 // pred_fallthru
      _
    // Predicated region
    $region22: #{tpu_custom_call.1} parent=1 // pred_check
      _
    $region23: #{tpu_custom_call.1} parent=1 // pred_check_branch
      %526 = sbr.rel (0) target = $region25
    $region24: #{tpu_custom_call.1} parent=1 // pred_region
      %s528 = ssub.s32 128, 128
      %529 = vsyncadd [#allocation5], %s528
      %s531 = sshll.u32 [#allocation4], 4
      %s532 = int_to_ptr.vmem [resolvable:$true] %s531
      %534 = dma.vmem_to_hbm [thread:$0]  %s532, 128, %s3, [#allocation5]
    $region25: #{tpu_custom_call.1} parent=1 // pred_fallthru
      _
    // Predicated region
    $region26: #{tpu_custom_call.1} parent=1 // pred_check
      _
    $region27: #{tpu_custom_call.1} parent=1 // pred_check_branch
      %536 = sbr.rel (0) target = $region29
    $region28: #{tpu_custom_call.1} parent=1 // pred_region
      %537 = dma.done [#allocation5], 128
    $region29: #{tpu_custom_call.1} parent=1 // pred_fallthru
      _
    %538 = vsyncpa [#allocation5], 1

</llo_original>
